<compile_context>
chip_gen: v6e
topology: v6e:2x2x1
jax: 0.10.0
libtpu: 0.0.40
codegen_flags: <defaults>
</compile_context>

<pallas_src>
import math

import jax
import jax.numpy as jnp
from jax.experimental import pallas as pl
from jax.experimental.pallas import tpu as pltpu


def _round_up(x, m):
    return (x + m - 1) // m * m


def _pick_tile(limit, dim, base):
    """Largest multiple of `base` that divides `dim` and is <= max(limit, base)."""
    t = max(base, (min(limit, dim) // base) * base)
    while dim % t:
        t -= base
    return t


def _linear_kernel_single_k(x_ref, wt_ref, b_ref, o_ref):
    # Whole K dimension in one tile: one MXU call, bias fused into the store.
    # x_ref: (tm, K)  wt_ref: (K, tn)  b_ref: (1, tn)  o_ref: (tm, tn)
    o_ref[...] = (jnp.dot(x_ref[...], wt_ref[...],
                          preferred_element_type=jnp.float32)
                  + b_ref[...].astype(jnp.float32)).astype(o_ref.dtype)


def _linear_kernel_multi_k(x_ref, wt_ref, b_ref, o_ref, acc_ref):
    # x_ref: (tm, tk)  wt_ref: (tk, tn)  b_ref: (1, tn)
    # o_ref: (tm, tn)  acc_ref: (tm, tn) f32, resident across the K axis.
    k = pl.program_id(2)

    @pl.when(k == 0)
    def _():
        # Fold the bias into the accumulator init (finalize becomes cast+store).
        acc_ref[...] = jnp.broadcast_to(b_ref[...].astype(jnp.float32),
                                        acc_ref.shape)

    acc_ref[...] += jnp.dot(x_ref[...], wt_ref[...],
                            preferred_element_type=jnp.float32)

    @pl.when(k == pl.num_programs(2) - 1)
    def _():
        o_ref[...] = acc_ref[...].astype(o_ref.dtype)


def make_linear_projector(weight, bias, *, tm=256, tn=256, tk=1024):
    """Build the projector once (transpose + lane-pad weight/bias at init),
    return a jitted fn computing y = x @ weight.T + bias over x's last dim."""
    n_dim = weight.shape[0]
    assert weight.shape == (n_dim, n_dim) and bias.shape == (n_dim,)

    n_pad = _round_up(n_dim, 128)                     # lane-align K and N
    wt = jnp.pad(weight.T, ((0, n_pad - n_dim), (0, n_pad - n_dim)))
    b2d = jnp.pad(bias, (0, n_pad - n_dim)).reshape(1, n_pad)

    tn_eff = _pick_tile(tn, n_pad, 128)
    tk_eff = _pick_tile(tk, n_pad, 128)
    k_steps = n_pad // tk_eff
    single_k = (k_steps == 1)

    @jax.jit
    def apply(x):
        assert x.shape[-1] == n_dim
        lead = x.shape[:-1]
        x2d = x.reshape(-1, n_dim)
        m = x2d.shape[0]

        # 8-aligned row tile, capped at tm; pad M up to a whole number of tiles.
        tm_eff = max(8, (min(tm, _round_up(m, 8)) // 8) * 8)
        m_pad = _round_up(m, tm_eff)
        x2d_p = jnp.pad(x2d, ((0, m_pad - m), (0, n_pad - n_dim)))

        flops = 2 * m_pad * n_pad * n_pad
        bytes_accessed = (x2d_p.size * x2d_p.dtype.itemsize
                          + wt.size * wt.dtype.itemsize
                          + b2d.size * b2d.dtype.itemsize
                          + m_pad * n_pad * x.dtype.itemsize)
        cost = pl.CostEstimate(flops=flops, transcendentals=0,
                               bytes_accessed=bytes_accessed)

        if single_k:
            grid = (m_pad // tm_eff, n_pad // tn_eff)
            out = pl.pallas_call(
                _linear_kernel_single_k,
                out_shape=jax.ShapeDtypeStruct((m_pad, n_pad), x.dtype),
                grid_spec=pltpu.PrefetchScalarGridSpec(
                    num_scalar_prefetch=0,
                    grid=grid,
                    in_specs=[
                        pl.BlockSpec((tm_eff, n_pad), lambda i, j: (i, 0)),
                        pl.BlockSpec((n_pad, tn_eff), lambda i, j: (0, j)),
                        pl.BlockSpec((1, tn_eff), lambda i, j: (0, j)),
                    ],
                    out_specs=pl.BlockSpec((tm_eff, tn_eff),
                                           lambda i, j: (i, j)),
                ),
                compiler_params=pltpu.CompilerParams(
                    dimension_semantics=("parallel", "parallel")),
                cost_estimate=cost,
            )(x2d_p, wt, b2d)
        else:
            grid = (m_pad // tm_eff, n_pad // tn_eff, k_steps)
            out = pl.pallas_call(
                _linear_kernel_multi_k,
                out_shape=jax.ShapeDtypeStruct((m_pad, n_pad), x.dtype),
                grid_spec=pltpu.PrefetchScalarGridSpec(
                    num_scalar_prefetch=0,
                    grid=grid,
                    in_specs=[
                        pl.BlockSpec((tm_eff, tk_eff), lambda i, j, k: (i, k)),
                        pl.BlockSpec((tk_eff, tn_eff), lambda i, j, k: (k, j)),
                        pl.BlockSpec((1, tn_eff), lambda i, j, k: (0, j)),
                    ],
                    out_specs=pl.BlockSpec((tm_eff, tn_eff),
                                           lambda i, j, k: (i, j)),
                    scratch_shapes=[pltpu.VMEM((tm_eff, tn_eff), jnp.float32)],
                ),
                compiler_params=pltpu.CompilerParams(
                    dimension_semantics=("parallel", "parallel", "arbitrary")),
                cost_estimate=cost,
            )(x2d_p, wt, b2d)

        return out[:m, :n_dim].reshape(*lead, n_dim)

    return apply


def init_params(key, n_dim, dtype=jnp.float32):
    """Matches LiearProjector._init_param: kaiming_uniform_ (a=0, fan_in)
    on weight, zeros on bias."""
    fan_in = n_dim
    bound = math.sqrt(6.0 / fan_in)          # gain=sqrt(2) * sqrt(3/fan_in)
    weight = jax.random.uniform(key, (n_dim, n_dim), dtype,
                                minval=-bound, maxval=bound)
    bias = jnp.zeros((n_dim,), dtype)
    return weight, bias


if __name__ == "__main__":
    def check(n_dim, lead_shape, key, random_bias=False, **tiles):
        k_w, k_b, k_x = jax.random.split(key, 3)
        weight, bias = init_params(k_w, n_dim)
        if random_bias:
            # exercise the bias-broadcast path (module init is zeros)
            bias = jax.random.normal(k_b, (n_dim,), jnp.float32)
        proj = make_linear_projector(weight, bias, **tiles)
        x = jax.random.normal(k_x, (*lead_shape, n_dim), dtype=jnp.float32)
        y = jax.block_until_ready(proj(x))
        y_ref = x @ weight.T + bias
        assert y.shape == x.shape
        err = float(jnp.max(jnp.abs(y - y_ref)))
        assert jnp.allclose(y, y_ref, atol=1e-4, rtol=1e-4), err

    key = jax.random.PRNGKey(0)
    k1, k2, k3 = jax.random.split(key, 3)

    # Case 1: tiny n_dim (lane-padded 32 -> 128), ragged row count (M=14 -> 16),
    #         single-K fused-bias kernel path.
    check(32, (2, 7), k1)
    # Case 2: force the multi-step K reduction path (tk=128 -> 3 k-steps)
    #         with a non-zero bias.
    check(384, (2, 5), k2, random_bias=True, tk=128)
    # Case 3: typical CLIP-ish width on the single-K path, 3-D leading dims.
    check(512, (2, 3, 4), k3, random_bias=True)

    print("KERNEL_OK")
</pallas_src>

<mosaic_0001>
module attributes {stable_mosaic.version = 11 : i64} {
  func.func @_linear_kernel_single_k(%arg0: i32, %arg1: i32, %arg2: memref<16x128xf32, #tpu.memory_space<vmem>>, %arg3: memref<128x128xf32, #tpu.memory_space<vmem>>, %arg4: memref<1x128xf32, #tpu.memory_space<vmem>>, %arg5: memref<16x128xf32, #tpu.memory_space<vmem>>) attributes {dimension_semantics = [#tpu.dimension_semantics<parallel>, #tpu.dimension_semantics<parallel>], iteration_bounds = array<i64: 1, 1>, scalar_prefetch = 0 : i64, scratch_operands = 0 : i64, tpu.core_type = #tpu.core_type<tc>, window_params = [{transform_indices = @transform_0, window_bounds = array<i64: 16, 128>}, {transform_indices = @transform_1, window_bounds = array<i64: 128, 128>}, {transform_indices = @transform_2, window_bounds = array<i64: 1, 128>}, {transform_indices = @transform_3, window_bounds = array<i64: 16, 128>}]} {
    %c0 = arith.constant 0 : index
    %c0_0 = arith.constant 0 : index
    %0 = vector.load %arg2[%c0, %c0_0] : memref<16x128xf32, #tpu.memory_space<vmem>>, vector<16x128xf32>
    %c0_1 = arith.constant 0 : index
    %c0_2 = arith.constant 0 : index
    %1 = vector.load %arg3[%c0_1, %c0_2] : memref<128x128xf32, #tpu.memory_space<vmem>>, vector<128x128xf32>
    %cst = arith.constant dense<0.000000e+00> : vector<16x128xf32>
    %2 = tpu.matmul %0, %1, %cst {dimension_numbers = #tpu.dot_dimension_numbers<[1], [0], [0], [1], [0, 0, 1, 1], [], []>} : vector<16x128xf32>, vector<128x128xf32>, vector<16x128xf32> -> vector<16x128xf32>
    %c0_3 = arith.constant 0 : index
    %c0_4 = arith.constant 0 : index
    %3 = vector.load %arg4[%c0_3, %c0_4] : memref<1x128xf32, #tpu.memory_space<vmem>>, vector<1x128xf32>
    %4 = vector.broadcast %3 : vector<1x128xf32> to vector<16x128xf32>
    %5 = arith.addf %2, %4 : vector<16x128xf32>
    %c0_5 = arith.constant 0 : index
    %c0_6 = arith.constant 0 : index
    %6 = vector.load %arg5[%c0_5, %c0_6] : memref<16x128xf32, #tpu.memory_space<vmem>>, vector<16x128xf32>
    tpu.vector_store %arg5[%c0_5, %c0_6], %5 {strides = array<i32>} : memref<16x128xf32, #tpu.memory_space<vmem>>, vector<16x128xf32>,
    return
  }
  func.func @transform_0(%arg0: i32, %arg1: i32) -> (i32, i32) {
    %c0_i32 = arith.constant 0 : i32
    %c0_i32_0 = arith.constant 0 : i32
    return %arg0, %c0_i32 : i32, i32
  }
  func.func @transform_1(%arg0: i32, %arg1: i32) -> (i32, i32) {
    %c0_i32 = arith.constant 0 : i32
    %c0_i32_0 = arith.constant 0 : i32
    return %c0_i32, %arg1 : i32, i32
  }
  func.func @transform_2(%arg0: i32, %arg1: i32) -> (i32, i32) {
    %c0_i32 = arith.constant 0 : i32
    %c0_i32_0 = arith.constant 0 : i32
    return %c0_i32, %arg1 : i32, i32
  }
  func.func @transform_3(%arg0: i32, %arg1: i32) -> (i32, i32) {
    %c0_i32 = arith.constant 0 : i32
    return %arg0, %arg1 : i32, i32
  }
}

</mosaic_0001>

<llo_original>
// kernel: apply.1
$region0: #{apply.1}
  #allocation0 [shape = 'u32[]', space=smem, size = 0x4, offset = 0x4, fixed_abs, tag = 'smem constant byte address 0x4 - core index']
  #allocation1 [shape = 'u32[144,128]{1,0:T(1,128)}', space=vmem, size = 0x12000, scoped, tag = 'internal scratch']
  %s0 = inlined_call_operand.vmem [shape: f32[16,128], index: 0, kind: input, shape index: {}]
  %s1 = inlined_call_operand.hbm [shape: f32[128,128], index: 1, kind: input, shape index: {}]
  %s2 = inlined_call_operand.vmem [shape: f32[1,128], index: 2, kind: input, shape index: {}]
  %s3 = inlined_call_operand.vmem [shape: f32[16,128], index: 3, kind: output, shape index: {}]
  %s4 = sld [smem:[#allocation0]]
  $region26: #{apply.1} parent=0
    _
  %s6 = ssub.s32 1, %s4
  %s7 = scalar_select 0, %s6, %s4
  $region1: #{apply.1} parent=0
    #allocation2 [shape = 'u8[65536]{0}', space=vmem, size = 0x10000, scoped, tag = 'input window, operand 1, single buffered']
    #allocation3 [shape = 's32[1]{0}', space=sflag, size = 0x4, scoped, tag = 'scoped memory for apply.1']
    %8 = vsyncpa [#allocation3], 0
    // Predicated region
    $region2: #{apply.1} parent=1 // pred_check
      _
    $region3: #{apply.1} parent=1 // pred_check_branch
      %10 = sbr.rel (0) target = $region5
    $region4: #{apply.1} parent=1 // pred_region
      _
    $region5: #{apply.1} parent=1 // pred_fallthru
      _
    // Predicated region
    $region6: #{apply.1} parent=1 // pred_check
      _
    $region7: #{apply.1} parent=1 // pred_check_branch
      %12 = sbr.rel (0) target = $region9
    $region8: #{apply.1} parent=1 // pred_region
      %s14 = ssub.s32 2048, 2048
      %15 = vsyncadd [#allocation3], %s14
      %s16 = sshll.u32 [#allocation2], 4
      %s17 = int_to_ptr.vmem [resolvable:$true] %s16
      %22 = dma.hbm_to_vmem [thread:$0]  %s1, 2048, %s17, [#allocation3], 128, 128, 8
    $region9: #{apply.1} parent=1 // pred_fallthru
      _
    // Predicated region
    $region10: #{apply.1} parent=1 // pred_check
      _
    $region11: #{apply.1} parent=1 // pred_check_branch
      %24 = sbr.rel (0) target = $region13
    $region12: #{apply.1} parent=1 // pred_region
      _
    $region13: #{apply.1} parent=1 // pred_fallthru
      _
    // Predicated region
    $region14: #{apply.1} parent=1 // pred_check
      _
    $region15: #{apply.1} parent=1 // pred_check_branch
      %26 = sbr.rel (0) target = $region17
    $region16: #{apply.1} parent=1 // pred_region
      %27 = dma.done [#allocation3], 2048
    $region17: #{apply.1} parent=1 // pred_fallthru
      _
    %v28 = vld [vmem:[%s0] sm:$0xff]
    %v29 = vld [vmem:[%s0 + $0x8] sm:$0xff]
    %v30 = vld [vmem:[#allocation2] sm:$0xff]
    %v31 = vld [vmem:[#allocation2 + $0x8] sm:$0xff]
    %v32 = vld [vmem:[#allocation2 + $0x10] sm:$0xff]
    %v33 = vld [vmem:[#allocation2 + $0x18] sm:$0xff]
    %v34 = vld [vmem:[#allocation2 + $0x20] sm:$0xff]
    %v35 = vld [vmem:[#allocation2 + $0x28] sm:$0xff]
    %v36 = vld [vmem:[#allocation2 + $0x30] sm:$0xff]
    %v37 = vld [vmem:[#allocation2 + $0x38] sm:$0xff]
    %v38 = vld [vmem:[#allocation2 + $0x40] sm:$0xff]
    %v39 = vld [vmem:[#allocation2 + $0x48] sm:$0xff]
    %v40 = vld [vmem:[#allocation2 + $0x50] sm:$0xff]
    %v41 = vld [vmem:[#allocation2 + $0x58] sm:$0xff]
    %v42 = vld [vmem:[#allocation2 + $0x60] sm:$0xff]
    %v43 = vld [vmem:[#allocation2 + $0x68] sm:$0xff]
    %v44 = vld [vmem:[#allocation2 + $0x70] sm:$0xff]
    %v45 = vld [vmem:[#allocation2 + $0x78] sm:$0xff]
    %v46 = vld [vmem:[%s2] sm:$0x1]
    %v48 = vlaneseq
    %v49 = vshrl.u32 %v48, 7
    %v50 = vsub.s32 0, %v49
    %v51 = vrot.slane %v46, %v50
    %53 = vmatprep.subr.mxu0 0.0
    %54 = vmatpush1.msra.mxu0 %v45
    %55 = vmatprep.subr.mxu0 0.0
    %56 = vmatpush1.msra.mxu0 %v44
    %57 = vmatprep.subr.mxu0 0.0
    %58 = vmatpush1.msra.mxu0 %v43
    %59 = vmatprep.subr.mxu0 0.0
    %60 = vmatpush1.msra.mxu0 %v42
    %61 = vmatprep.subr.mxu0 0.0
    %62 = vmatpush1.msra.mxu0 %v41
    %63 = vmatprep.subr.mxu0 0.0
    %64 = vmatpush1.msra.mxu0 %v40
    %65 = vmatprep.subr.mxu0 0.0
    %66 = vmatpush1.msra.mxu0 %v39
    %67 = vmatprep.subr.mxu0 0.0
    %68 = vmatpush1.msra.mxu0 %v38
    %69 = vmatprep.subr.mxu0 0.0
    %70 = vmatpush1.msra.mxu0 %v37
    %71 = vmatprep.subr.mxu0 0.0
    %72 = vmatpush1.msra.mxu0 %v36
    %73 = vmatprep.subr.mxu0 0.0
    %74 = vmatpush1.msra.mxu0 %v35
    %75 = vmatprep.subr.mxu0 0.0
    %76 = vmatpush1.msra.mxu0 %v34
    %77 = vmatprep.subr.mxu0 0.0
    %78 = vmatpush1.msra.mxu0 %v33
    %79 = vmatprep.subr.mxu0 0.0
    %80 = vmatpush1.msra.mxu0 %v32
    %81 = vmatprep.subr.mxu0 0.0
    %82 = vmatpush1.msra.mxu0 %v31
    %83 = vmatprep.subr.mxu0 0.0
    %84 = vmatpush1.msra.mxu0 %v30
    %85 = vmatprep.subr.mxu0 0.0
    %86 = vmatpush2.msra.mxu0 0.0
    %87 = vmatprep.subr.mxu0 0.0
    %88 = vmatpush2.msra.mxu0 0.0
    %89 = vmatprep.subr.mxu0 0.0
    %90 = vmatpush2.msra.mxu0 0.0
    %91 = vmatprep.subr.mxu0 0.0
    %92 = vmatpush2.msra.mxu0 0.0
    %93 = vmatprep.subr.mxu0 0.0
    %94 = vmatpush2.msra.mxu0 0.0
    %95 = vmatprep.subr.mxu0 0.0
    %96 = vmatpush2.msra.mxu0 0.0
    %97 = vmatprep.subr.mxu0 0.0
    %98 = vmatpush2.msra.mxu0 0.0
    %99 = vmatprep.subr.mxu0 0.0
    %100 = vmatpush2.msra.mxu0 0.0
    %101 = vmatprep.subr.mxu0 0.0
    %102 = vmatpush2.msra.mxu0 0.0
    %103 = vmatprep.subr.mxu0 0.0
    %104 = vmatpush2.msra.mxu0 0.0
    %105 = vmatprep.subr.mxu0 0.0
    %106 = vmatpush2.msra.mxu0 0.0
    %107 = vmatprep.subr.mxu0 0.0
    %108 = vmatpush2.msra.mxu0 0.0
    %109 = vmatprep.subr.mxu0 0.0
    %110 = vmatpush2.msra.mxu0 0.0
    %111 = vmatprep.subr.mxu0 0.0
    %112 = vmatpush2.msra.mxu0 0.0
    %113 = vmatprep.subr.mxu0 0.0
    %114 = vmatpush2.msra.mxu0 0.0
    %115 = vmatprep.subr.mxu0 0.0
    %116 = vmatpush2.msra.mxu0 0.0
    %117 = vmatprep.mubr.f32.mxu0 0.0
    %118 = vmatmul.mubr.f32.gmra.mxu0 %v28
    %v119 = vpop.f32.mrf.mxu0
    %v120 = vadd.f32 %v51, %v119
    %v121 = vpop.f32.mrf.mxu0
    %122 = vmatprep.mubr.f32.mxu0 0.0
    %123 = vmatmul.mubr.f32.gmra.mxu0 %v29
    %v124 = vpop.f32.mrf.mxu0
    %v125 = vadd.f32 %v51, %v124
    %v126 = vpop.f32.mrf.mxu0
    %127 = vdwg.mxu0
    %128 = vst [vmem:[%s3] sm:$0xff] %v120
    %129 = vst [vmem:[%s3 + $0x8] sm:$0xff] %v125
    // Predicated region
    $region18: #{apply.1} parent=1 // pred_check
      _
    $region19: #{apply.1} parent=1 // pred_check_branch
      %131 = sbr.rel (0) target = $region21
    $region20: #{apply.1} parent=1 // pred_region
      _
    $region21: #{apply.1} parent=1 // pred_fallthru
      _
    // Predicated region
    $region22: #{apply.1} parent=1 // pred_check
      _
    $region23: #{apply.1} parent=1 // pred_check_branch
      %133 = sbr.rel (0) target = $region25
    $region24: #{apply.1} parent=1 // pred_region
      _
    $region25: #{apply.1} parent=1 // pred_fallthru
      _
    %134 = vsyncpa [#allocation3], 1

</llo_original>
